<compile_context>
chip_gen: v5e
topology: v5e:2x2
jax: 0.10.0
libtpu: 0.0.40
codegen_flags: <defaults>
</compile_context>

<pallas_src>
import functools

import numpy as np
import jax
import jax.numpy as jnp
from jax.experimental import pallas as pl
from jax.experimental.pallas import tpu as pltpu


def _backproject_kernel(invk_ref, depth_ref, out_ref, *, h_tile, width):
    # invk_ref  : SMEM (3, 3)             -- inv_K for this batch element
    # depth_ref : VMEM (h_tile, width)    -- depth tile
    # out_ref   : VMEM (4, h_tile, width) -- cam_points tile [X; Y; Z; 1]
    t = pl.program_id(1)
    row0 = (t * h_tile).astype(jnp.float32)

    # Pixel coordinates generated in-register (no HBM traffic, no VMEM tile).
    x = jax.lax.broadcasted_iota(jnp.int32, (h_tile, width), 1).astype(jnp.float32)
    y = jax.lax.broadcasted_iota(jnp.int32, (h_tile, width), 0).astype(jnp.float32)
    y = y + row0

    d = depth_ref[...]  # (h_tile, width)

    # Hoist the nine inv_K scalars once per grid step.
    k00 = invk_ref[0, 0]; k01 = invk_ref[0, 1]; k02 = invk_ref[0, 2]
    k10 = invk_ref[1, 0]; k11 = invk_ref[1, 1]; k12 = invk_ref[1, 2]
    k20 = invk_ref[2, 0]; k21 = invk_ref[2, 1]; k22 = invk_ref[2, 2]

    # cam[i] = depth * (K[i,0]*x + K[i,1]*y + K[i,2])   (VPU FMAs; no MXU)
    cx = d * (k00 * x + k01 * y + k02)
    cy = d * (k10 * x + k11 * y + k12)
    cz = d * (k20 * x + k21 * y + k22)
    ones = jnp.ones_like(d)

    # One dense store of the whole tile.
    out_ref[...] = jnp.stack([cx, cy, cz, ones], axis=0)


def _choose_h_tile(height, width, max_tile_bytes=1 << 20):
    """Largest multiple-of-8 divisor of `height` whose (depth + output) tile
    stays under ~max_tile_bytes; falls back to the full height (always legal)."""
    bytes_per_row = (4 + 1) * width * 4  # f32: 4 output channels + 1 depth row
    cap = max(8, (max_tile_bytes // max(bytes_per_row, 1)) // 8 * 8)
    best = None
    t = 8
    while t <= min(height, cap):
        if height % t == 0:
            best = t
        t += 8
    return best if best is not None else height


def backproject_depth(depth, inv_K, batchsize, height, width):
    """depth: (B, 1, H, W) or (B, H, W) float32, inv_K: (B, 3, 3) float32
    -> (B, 4, H*W) float32 (cam_points, rows [X; Y; Z; 1])."""
    hw = height * width
    depth_hw = depth.reshape(batchsize, height, width).astype(jnp.float32)
    inv_K = inv_K.astype(jnp.float32)

    h_tile = _choose_h_tile(height, width)
    n_tiles = height // h_tile
    assert n_tiles * h_tile == height

    kernel = functools.partial(_backproject_kernel, h_tile=h_tile, width=width)

    cost = pl.CostEstimate(
        flops=15 * batchsize * hw,
        transcendentals=0,
        bytes_accessed=20 * batchsize * hw,  # 4 B depth in + 16 B cam out per px
    )

    out = pl.pallas_call(
        kernel,
        out_shape=jax.ShapeDtypeStruct((batchsize, 4, height, width), jnp.float32),
        grid_spec=pltpu.PrefetchScalarGridSpec(
            num_scalar_prefetch=0,
            grid=(batchsize, n_tiles),
            in_specs=[
                # inv_K: one (3,3) block per batch element, scalar reads in SMEM.
                pl.BlockSpec((None, 3, 3), lambda b, t: (b, 0, 0),
                             memory_space=pltpu.SMEM),
                # depth: (h_tile, W) tile per (batch, tile) grid step.
                pl.BlockSpec((None, h_tile, width), lambda b, t: (b, t, 0)),
            ],
            out_specs=pl.BlockSpec((None, 4, h_tile, width),
                                   lambda b, t: (b, 0, t, 0)),
        ),
        compiler_params=pltpu.CompilerParams(
            dimension_semantics=("parallel", "parallel")),
        cost_estimate=cost,
    )(inv_K, depth_hw)

    # Free row-major reshape to the module's (B, 4, H*W) output layout.
    return out.reshape(batchsize, 4, hw)


def make_pix_coords(height, width):
    """Same construction as the PyTorch module's __init__ (xy meshgrid).
    Used only by the pure-JAX reference below."""
    mg = np.meshgrid(range(width), range(height), indexing="xy")   # [X, Y]
    id_coords = np.stack(mg, axis=0).astype(np.float32)            # (2, H, W)
    x_flat = id_coords[0].reshape(-1)
    y_flat = id_coords[1].reshape(-1)
    ones = np.ones_like(x_flat)
    pix = np.stack([x_flat, y_flat, ones], axis=0)                  # (3, H*W)
    return jnp.asarray(pix, dtype=jnp.float32)


def backproject_depth_ref(depth, inv_K, batchsize, height, width):
    """Pure-JAX reference matching the PyTorch forward."""
    hw = height * width
    pix = make_pix_coords(height, width)
    pix_b = jnp.broadcast_to(pix[None], (batchsize, 3, hw))
    cam = jnp.matmul(inv_K, pix_b)                                   # (B, 3, HW)
    cam = depth.reshape(batchsize, 1, hw) * cam
    ones = jnp.ones((batchsize, 1, hw), jnp.float32)
    return jnp.concatenate([cam, ones], axis=1)                      # (B, 4, HW)


if __name__ == "__main__":
    B, H, W = 2, 16, 16
    key = jax.random.PRNGKey(0)
    k_d, k_k = jax.random.split(key)

    depth = jax.random.uniform(k_d, (B, 1, H, W), jnp.float32,
                               minval=0.1, maxval=10.0)
    inv_K = jax.random.normal(k_k, (B, 3, 3), jnp.float32) * 0.1 \
        + jnp.eye(3, dtype=jnp.float32)[None]

    out = backproject_depth(depth, inv_K, B, H, W)
    out = jax.block_until_ready(out)

    ref = backproject_depth_ref(depth, inv_K, B, H, W)
    assert out.shape == (B, 4, H * W)
    np.testing.assert_allclose(np.asarray(out), np.asarray(ref),
                               rtol=1e-5, atol=1e-5)
    print("KERNEL_OK")
</pallas_src>

<mosaic_0001>
module attributes {stable_mosaic.version = 11 : i64} {
  func.func @_backproject_kernel(%arg0: i32, %arg1: i32, %arg2: memref<1x3x3xf32, #tpu.memory_space<smem>>, %arg3: memref<1x16x16xf32, #tpu.memory_space<vmem>>, %arg4: memref<1x4x16x16xf32, #tpu.memory_space<vmem>>) attributes {dimension_semantics = [#tpu.dimension_semantics<parallel>, #tpu.dimension_semantics<parallel>], iteration_bounds = array<i64: 2, 1>, scalar_prefetch = 0 : i64, scratch_operands = 0 : i64, tpu.core_type = #tpu.core_type<tc>, window_params = [{transform_indices = @transform_0, window_bounds = array<i64: 1, 3, 3>}, {transform_indices = @transform_1, window_bounds = array<i64: 1, 16, 16>}, {transform_indices = @transform_2, window_bounds = array<i64: 1, 4, 16, 16>}]} {
    %c16_i32 = arith.constant 16 : i32
    %0 = arith.muli %arg1, %c16_i32 : i32
    %1 = arith.sitofp %0 : i32 to f32
    %2 = tpu.iota {dimensions = array<i32: 1>} : vector<16x16xi32>
    %3 = arith.sitofp %2 : vector<16x16xi32> to vector<16x16xf32>
    %4 = tpu.iota {dimensions = array<i32: 0>} : vector<16x16xi32>
    %5 = arith.sitofp %4 : vector<16x16xi32> to vector<16x16xf32>
    %6 = vector.broadcast %1 : f32 to vector<16x16xf32>
    %7 = arith.addf %5, %6 : vector<16x16xf32>
    %c0 = arith.constant 0 : index
    %c0_0 = arith.constant 0 : index
    %c0_1 = arith.constant 0 : index
    %8 = vector.load %arg3[%c0, %c0_0, %c0_1] : memref<1x16x16xf32, #tpu.memory_space<vmem>>, vector<1x16x16xf32>
    %9 = vector.shape_cast %8 : vector<1x16x16xf32> to vector<16x16xf32>
    %c0_2 = arith.constant 0 : index
    %c0_3 = arith.constant 0 : index
    %c0_4 = arith.constant 0 : index
    %10 = memref.load %arg2[%c0_2, %c0_3, %c0_4] : memref<1x3x3xf32, #tpu.memory_space<smem>>
    %c0_5 = arith.constant 0 : index
    %c0_6 = arith.constant 0 : index
    %c1 = arith.constant 1 : index
    %11 = memref.load %arg2[%c0_5, %c0_6, %c1] : memref<1x3x3xf32, #tpu.memory_space<smem>>
    %c0_7 = arith.constant 0 : index
    %c0_8 = arith.constant 0 : index
    %c2 = arith.constant 2 : index
    %12 = memref.load %arg2[%c0_7, %c0_8, %c2] : memref<1x3x3xf32, #tpu.memory_space<smem>>
    %c0_9 = arith.constant 0 : index
    %c1_10 = arith.constant 1 : index
    %c0_11 = arith.constant 0 : index
    %13 = memref.load %arg2[%c0_9, %c1_10, %c0_11] : memref<1x3x3xf32, #tpu.memory_space<smem>>
    %c0_12 = arith.constant 0 : index
    %c1_13 = arith.constant 1 : index
    %c1_14 = arith.constant 1 : index
    %14 = memref.load %arg2[%c0_12, %c1_13, %c1_14] : memref<1x3x3xf32, #tpu.memory_space<smem>>
    %c0_15 = arith.constant 0 : index
    %c1_16 = arith.constant 1 : index
    %c2_17 = arith.constant 2 : index
    %15 = memref.load %arg2[%c0_15, %c1_16, %c2_17] : memref<1x3x3xf32, #tpu.memory_space<smem>>
    %c0_18 = arith.constant 0 : index
    %c2_19 = arith.constant 2 : index
    %c0_20 = arith.constant 0 : index
    %16 = memref.load %arg2[%c0_18, %c2_19, %c0_20] : memref<1x3x3xf32, #tpu.memory_space<smem>>
    %c0_21 = arith.constant 0 : index
    %c2_22 = arith.constant 2 : index
    %c1_23 = arith.constant 1 : index
    %17 = memref.load %arg2[%c0_21, %c2_22, %c1_23] : memref<1x3x3xf32, #tpu.memory_space<smem>>
    %c0_24 = arith.constant 0 : index
    %c2_25 = arith.constant 2 : index
    %c2_26 = arith.constant 2 : index
    %18 = memref.load %arg2[%c0_24, %c2_25, %c2_26] : memref<1x3x3xf32, #tpu.memory_space<smem>>
    %19 = vector.broadcast %10 : f32 to vector<16x16xf32>
    %20 = arith.mulf %19, %3 : vector<16x16xf32>
    %21 = vector.broadcast %11 : f32 to vector<16x16xf32>
    %22 = arith.mulf %21, %7 : vector<16x16xf32>
    %23 = arith.addf %20, %22 : vector<16x16xf32>
    %24 = vector.broadcast %12 : f32 to vector<16x16xf32>
    %25 = arith.addf %23, %24 : vector<16x16xf32>
    %26 = arith.mulf %9, %25 : vector<16x16xf32>
    %27 = vector.broadcast %13 : f32 to vector<16x16xf32>
    %28 = arith.mulf %27, %3 : vector<16x16xf32>
    %29 = vector.broadcast %14 : f32 to vector<16x16xf32>
    %30 = arith.mulf %29, %7 : vector<16x16xf32>
    %31 = arith.addf %28, %30 : vector<16x16xf32>
    %32 = vector.broadcast %15 : f32 to vector<16x16xf32>
    %33 = arith.addf %31, %32 : vector<16x16xf32>
    %34 = arith.mulf %9, %33 : vector<16x16xf32>
    %35 = vector.broadcast %16 : f32 to vector<16x16xf32>
    %36 = arith.mulf %35, %3 : vector<16x16xf32>
    %37 = vector.broadcast %17 : f32 to vector<16x16xf32>
    %38 = arith.mulf %37, %7 : vector<16x16xf32>
    %39 = arith.addf %36, %38 : vector<16x16xf32>
    %40 = vector.broadcast %18 : f32 to vector<16x16xf32>
    %41 = arith.addf %39, %40 : vector<16x16xf32>
    %42 = arith.mulf %9, %41 : vector<16x16xf32>
    %cst = arith.constant 1.000000e+00 : f32
    %43 = vector.broadcast %cst : f32 to vector<16x16xf32>
    %44 = vector.shape_cast %26 : vector<16x16xf32> to vector<1x16x16xf32>
    %45 = vector.shape_cast %34 : vector<16x16xf32> to vector<1x16x16xf32>
    %46 = vector.shape_cast %42 : vector<16x16xf32> to vector<1x16x16xf32>
    %47 = vector.shape_cast %43 : vector<16x16xf32> to vector<1x16x16xf32>
    %48 = tpu.concatenate %44, %45, %46, %47 in 0 : vector<1x16x16xf32>, vector<1x16x16xf32>, vector<1x16x16xf32>, vector<1x16x16xf32> -> vector<4x16x16xf32>
    %c0_27 = arith.constant 0 : index
    %c0_28 = arith.constant 0 : index
    %c0_29 = arith.constant 0 : index
    %c0_30 = arith.constant 0 : index
    %49 = vector.load %arg4[%c0_27, %c0_28, %c0_29, %c0_30] : memref<1x4x16x16xf32, #tpu.memory_space<vmem>>, vector<1x4x16x16xf32>
    %50 = vector.shape_cast %49 : vector<1x4x16x16xf32> to vector<4x16x16xf32>
    %51 = vector.shape_cast %48 : vector<4x16x16xf32> to vector<1x4x16x16xf32>
    tpu.vector_store %arg4[%c0_27, %c0_28, %c0_29, %c0_30], %51 {strides = array<i32>} : memref<1x4x16x16xf32, #tpu.memory_space<vmem>>, vector<1x4x16x16xf32>,
    return
  }
  func.func @transform_0(%arg0: i32, %arg1: i32) -> (i32, i32, i32) {
    %c0_i32 = arith.constant 0 : i32
    %c0_i32_0 = arith.constant 0 : i32
    %c0_i32_1 = arith.constant 0 : i32
    return %arg0, %c0_i32, %c0_i32_0 : i32, i32, i32
  }
  func.func @transform_1(%arg0: i32, %arg1: i32) -> (i32, i32, i32) {
    %c0_i32 = arith.constant 0 : i32
    %c0_i32_0 = arith.constant 0 : i32
    return %arg0, %arg1, %c0_i32 : i32, i32, i32
  }
  func.func @transform_2(%arg0: i32, %arg1: i32) -> (i32, i32, i32, i32) {
    %c0_i32 = arith.constant 0 : i32
    %c0_i32_0 = arith.constant 0 : i32
    %c0_i32_1 = arith.constant 0 : i32
    return %arg0, %c0_i32, %arg1, %c0_i32_0 : i32, i32, i32, i32
  }
}

</mosaic_0001>

<llo_original>
// kernel: tpu_custom_call.1
$region0: #{tpu_custom_call.1}
  #allocation0 [shape = 'u32[]', space=smem, size = 0x4, offset = 0x4, fixed_abs, tag = 'smem constant byte address 0x4 - core index']
  #allocation1 [shape = 'u32[72,128]{1,0:T(1,128)}', space=vmem, size = 0x9000, scoped, tag = 'internal scratch']
  %s0 = inlined_call_operand.vmem [shape: f32[2,3,3], index: 0, kind: input, shape index: {}]
  %s1 = inlined_call_operand.hbm [shape: f32[2,16,16], index: 1, kind: input, shape index: {}]
  %s2 = inlined_call_operand.hbm [shape: f32[2,4,16,16], index: 2, kind: output, shape index: {}]
  %s3 = sld [smem:[#allocation0]]
  $region49: #{tpu_custom_call.1} parent=0
    _
  %s5 = ssub.s32 1, %s3
  %s6 = scalar_select 0, %s5, %s3
  $region1: #{tpu_custom_call.1} parent=0
    #allocation2 [shape = 'u8[4096]{0}', space=smem, size = 0x1000, scoped, tag = 'input window, operand 0']
    #allocation3 [shape = 's32[2]{0}', space=sflag, size = 0x8, scoped, tag = 'scoped memory for tpu_custom_call.1']
    #allocation4 [shape = 's32[2]{0}', space=sflag, size = 0x8, scoped, tag = 'scoped memory for tpu_custom_call.1']
    #allocation5 [shape = 's32[2]{0}', space=sflag, size = 0x8, scoped, tag = 'scoped memory for tpu_custom_call.1']
    #allocation6 [shape = 'u8[16384]{0}', space=vmem, size = 0x4000, scoped, tag = 'input window, operand 1']
    #allocation7 [shape = 'u8[65536]{0}', space=vmem, size = 0x10000, scoped, tag = 'output window, operand 0']
    %7 = vsyncpa [#allocation5], 0
    %s8 = scalar_lea.sflag [#allocation5], 1
    %9 = vsyncpa %s8, 0
    %10 = vsyncpa [#allocation3], 0
    %s11 = scalar_lea.sflag [#allocation3], 1
    %12 = vsyncpa %s11, 0
    %13 = vsyncpa [#allocation4], 0
    %s14 = scalar_lea.sflag [#allocation4], 1
    %15 = vsyncpa %s14, 0
    loop: start=0, step=1, limit=4
    $region2: #{tpu_custom_call.1} parent=1 // loop_pre_header
      _
    $region3: #{tpu_custom_call.1} parent=1 // loop_header
      %s17 = sphi 0, %s21
      %p18 = scmp.ge.s32.totalorder %s17, 4
      %s24 = sphi 0, %s36
      %s25 = sphi 0, %s32
      %s26 = sphi 0, %s24
      %s27 = sphi 0, %s25
      %s28 = sphi 0, %s26
      %s29 = sphi 0, %s27
      %s39 = sphi 0, %s41
      %s42 = sphi 0, %s39
      %s43 = sphi 0, %s42
      %s59 = sphi 0, %s43
      %s67 = sphi 0, %s69
      %s70 = sphi 0, %s67
      %s71 = sphi 0, %s70
      %s87 = sphi 0, %s71
      %s95 = sphi 0, %s97
      %s98 = sphi 0, %s95
      %s99 = sphi 0, %s98
      %s115 = sphi 0, %s99
    $region4: #{tpu_custom_call.1} parent=1 // loop_header_branch
      %20 = sbr.rel (%p18) target = $region8
    $region5: #{tpu_custom_call.1} parent=1 // loop_body
      %s22 = ssub.s32 %s17, 1
      %s23 = ssub.s32 %s17, 2
      %s30 = sadd.s32 1, %s25
      %p31 = scmp.ge.s32.totalorder %s30, 1
      %s32 = scalar_select %p31, 0, %s30
      %s33 = sadd.s32 1, %s24
      %s34 = scalar_select %p31, %s33, %s24
      %p35 = scmp.ge.s32.totalorder %s34, 2
      %s36 = scalar_select %p35, 0, %s34
      %s37 = ssub.s32 %s24, %s36
      %p38 = scmp.eq.s32.totalorder %s37, 0
      %s40 = sadd.s32 %s39, 1
      %s41 = scalar_select %p38, %s39, %s40
      %p44 = pneg %p38
      %p45 = scmp.eq.s32.totalorder %s17, 1
      %p46 = por %p44, %p45
      %p47 = scmp.ne.s32.totalorder %s39, %s42
      %p48 = scmp.eq.s32.totalorder %s17, 0
      %p49 = por %p47, %p48
      %p50 = scmp.ne.s32.totalorder %s39, %s42
      %p51 = scmp.eq.s32.totalorder %s22, 1
      %p52 = por %p50, %p51
      %p53 = scmp.ne.s32.totalorder %s42, %s43
      %p54 = scmp.eq.s32.totalorder %s22, 0
      %p55 = por %p53, %p54
      %p56 = scmp.ne.s32.totalorder %s42, %s43
      %p57 = scmp.eq.s32.totalorder %s23, 1
      %p58 = por %p56, %p57
      %p60 = scmp.ne.s32.totalorder %s43, %s59
      %p61 = scmp.eq.s32.totalorder %s23, 0
      %p62 = por %p60, %p61
      %s63 = ssub.s32 %s24, %s36
      %s64 = ssub.s32 %s25, %s32
      %s65 = sor.u32 %s63, %s64
      %p66 = scmp.eq.s32.totalorder %s65, 0
      %s68 = sadd.s32 %s67, 1
      %s69 = scalar_select %p66, %s67, %s68
      %p72 = pneg %p66
      %p73 = scmp.eq.s32.totalorder %s17, 1
      %p74 = por %p72, %p73
      %p75 = scmp.ne.s32.totalorder %s67, %s70
      %p76 = scmp.eq.s32.totalorder %s17, 0
      %p77 = por %p75, %p76
      %p78 = scmp.ne.s32.totalorder %s67, %s70
      %p79 = scmp.eq.s32.totalorder %s22, 1
      %p80 = por %p78, %p79
      %p81 = scmp.ne.s32.totalorder %s70, %s71
      %p82 = scmp.eq.s32.totalorder %s22, 0
      %p83 = por %p81, %p82
      %p84 = scmp.ne.s32.totalorder %s70, %s71
      %p85 = scmp.eq.s32.totalorder %s23, 1
      %p86 = por %p84, %p85
      %p88 = scmp.ne.s32.totalorder %s71, %s87
      %p89 = scmp.eq.s32.totalorder %s23, 0
      %p90 = por %p88, %p89
      %s91 = ssub.s32 %s24, %s36
      %s92 = ssub.s32 %s25, %s32
      %s93 = sor.u32 %s91, %s92
      %p94 = scmp.eq.s32.totalorder %s93, 0
      %s96 = sadd.s32 %s95, 1
      %s97 = scalar_select %p94, %s95, %s96
      %p100 = pneg %p94
      %p101 = scmp.eq.s32.totalorder %s17, 1
      %p102 = por %p100, %p101
      %p103 = scmp.ne.s32.totalorder %s95, %s98
      %p104 = scmp.eq.s32.totalorder %s17, 0
      %p105 = por %p103, %p104
      %p106 = scmp.ne.s32.totalorder %s95, %s98
      %p107 = scmp.eq.s32.totalorder %s22, 1
      %p108 = por %p106, %p107
      %p109 = scmp.ne.s32.totalorder %s98, %s99
      %p110 = scmp.eq.s32.totalorder %s22, 0
      %p111 = por %p109, %p110
      %p112 = scmp.ne.s32.totalorder %s98, %s99
      %p113 = scmp.eq.s32.totalorder %s23, 1
      %p114 = por %p112, %p113
      %p116 = scmp.ne.s32.totalorder %s99, %s115
      %p117 = scmp.eq.s32.totalorder %s23, 0
      %p118 = por %p116, %p117
      %p119 = scmp.le.s32.totalorder 1, %s17
      %p120 = scmp.lt.s32.totalorder %s17, 3
      %p121 = pnand %p119, %p120
      %p122 = pneg %p121
      // Predicated region
      $region9: #{tpu_custom_call.1} parent=5 // pred_check
        _
      $region10: #{tpu_custom_call.1} parent=5 // pred_check_branch
        %124 = sbr.rel (%p121) target = $region12
      $region11: #{tpu_custom_call.1} parent=5 // pred_region
        %s125 = ssub.s32 %s17, 1
      $region12: #{tpu_custom_call.1} parent=5 // pred_fallthru
        _
      %p126 = scmp.lt.s32.totalorder %s17, 2
      // Predicated region
      $region13: #{tpu_custom_call.1} parent=5 // pred_check
        %p127 = pneg %p126
      $region14: #{tpu_custom_call.1} parent=5 // pred_check_branch
        %129 = sbr.rel (%p127) target = $region16
      $region15: #{tpu_custom_call.1} parent=5 // pred_region
        // Predicated region
        $region17: #{tpu_custom_call.1} parent=15 // pred_check
          %p130 = pneg %p49
        $region18: #{tpu_custom_call.1} parent=15 // pred_check_branch
          %132 = sbr.rel (%p130) target = $region20
        $region19: #{tpu_custom_call.1} parent=15 // pred_region
          %s133 = sand.u32 %s39, 1
          %s134 = scalar_lea.sflag [#allocation5], %s133
          %s135 = sand.u32 %s39, 1
          %s136 = smul.addr %s135, 512
          %s137 = scalar_lea.smem [#allocation2], %s136
          %139 = vsyncadd %s134, 0
          %s140 = smul.addr %s24, 4
          %s141 = scalar_lea.vmem %s0, %s140
          %s143 = sshll.u32 %s141, 4
          %s144 = int_to_ptr.vmem [resolvable:$true] %s143
          %146 = dma.vmem_to_smem %s144, 64, %s137, %s134
        $region20: #{tpu_custom_call.1} parent=15 // pred_fallthru
          _
        // Predicated region
        $region21: #{tpu_custom_call.1} parent=15 // pred_check
          %p147 = pneg %p77
        $region22: #{tpu_custom_call.1} parent=15 // pred_check_branch
          %149 = sbr.rel (%p147) target = $region24
        $region23: #{tpu_custom_call.1} parent=15 // pred_region
          %s150 = sand.u32 %s67, 1
          %s151 = scalar_lea.sflag [#allocation3], %s150
          %s152 = sand.u32 %s67, 1
          %s153 = smul.addr %s152, 16
          %s154 = scalar_lea.vmem [#allocation6], %s153
          %s155 = smul.u32 2, %s25
          %157 = vsyncadd %s151, 0
          %s158 = smul.addr %s24, 2
          %s159 = sadd.s32 %s155, %s158
          %s160 = smul.addr %s159, 8
          %s161 = scalar_lea.hbm %s1, %s160
          %s162 = sshll.u32 %s161, 4
          %s163 = int_to_ptr.hbm [resolvable:$true] %s162
          %s164 = sshll.u32 %s154, 4
          %s165 = int_to_ptr.vmem [resolvable:$true] %s164
          %170 = dma.hbm_to_vmem [thread:$0]  %s163, 256, %s165, %s151, 128, 128, 8
        $region24: #{tpu_custom_call.1} parent=15 // pred_fallthru
          _
      $region16: #{tpu_custom_call.1} parent=5 // pred_fallthru
        _
      %p171 = scmp.le.s32.totalorder 1, %s17
      %p172 = scmp.lt.s32.totalorder %s17, 3
      %p173 = pnand %p171, %p172
      %p174 = pneg %p173
      // Predicated region
      $region25: #{tpu_custom_call.1} parent=5 // pred_check
        _
      $region26: #{tpu_custom_call.1} parent=5 // pred_check_branch
        %176 = sbr.rel (%p173) target = $region28
      $region27: #{tpu_custom_call.1} parent=5 // pred_region
        %s177 = ssub.s32 %s17, 1
        %s178 = sand.u32 %s42, 1
        %s179 = scalar_lea.sflag [#allocation5], %s178
        %s180 = sand.u32 %s42, 1
        %s181 = smul.addr %s180, 512
        %s182 = scalar_lea.smem [#allocation2], %s181
        // Predicated region
        $region29: #{tpu_custom_call.1} parent=27 // pred_check
          %p183 = pneg %p55
        $region30: #{tpu_custom_call.1} parent=27 // pred_check_branch
          %185 = sbr.rel (%p183) target = $region32
        $region31: #{tpu_custom_call.1} parent=27 // pred_region
          %187 = dma.done %s179, 64
        $region32: #{tpu_custom_call.1} parent=27 // pred_fallthru
          _
        %s188 = sand.u32 %s70, 1
        %s189 = scalar_lea.sflag [#allocation3], %s188
        %s190 = sand.u32 %s70, 1
        %s191 = smul.addr %s190, 16
        %s192 = scalar_lea.vmem [#allocation6], %s191
        // Predicated region
        $region33: #{tpu_custom_call.1} parent=27 // pred_check
          %p193 = pneg %p83
        $region34: #{tpu_custom_call.1} parent=27 // pred_check_branch
          %195 = sbr.rel (%p193) target = $region36
        $region35: #{tpu_custom_call.1} parent=27 // pred_region
          %197 = dma.done %s189, 256
        $region36: #{tpu_custom_call.1} parent=27 // pred_fallthru
          _
        %198 = sfence
        %s199 = sand.u32 %s42, 1
        %s200 = scalar_lea.sflag [#allocation5], %s199
        %s201 = sand.u32 %s42, 1
        %s202 = smul.addr %s201, 512
        %s203 = scalar_lea.smem [#allocation2], %s202
        %p204 = pneg %p55
        %p205 = pneg %p52
        %s206 = sand.u32 %s70, 1
        %s207 = scalar_lea.sflag [#allocation3], %s206
        %s208 = sand.u32 %s70, 1
        %s209 = smul.addr %s208, 16
        %s210 = scalar_lea.vmem [#allocation6], %s209
        %p211 = pneg %p83
        %p212 = pneg %p80
        %p213 = pneg %p111
        %p214 = pneg %p108
        %s215 = sand.u32 %s98, 1
        %s216 = scalar_lea.sflag [#allocation4], %s215
        %s217 = sand.u32 %s98, 1
        %s218 = smul.addr %s217, 64
        %s219 = scalar_lea.vmem [#allocation7], %s218
        %s220 = smul.u32 2, %s27
        %s221 = smul.u32 2, %s27
        %s222 = smul.u32 %s27, 16
        %s223 = scvt.s32.f32 %s222
        %v224 = vlaneseq
        %v225 = vand.u32 %v224, 127
        %v226 = vcvt.s32.f32 %v225
        %v227 = vlaneseq
        %v228 = vshrl.u32 %v227, 7
        %v229 = vadd.s32 %v228, 8
        %v230 = vcvt.s32.f32 %v228
        %v231 = vcvt.s32.f32 %v229
        %v232 = vstv %s223
        %v233 = vadd.f32 %v230, %v232
        %v234 = vadd.f32 %v231, %v232
        %v235 = vld [vmem:[%s192] sm:$0xff]
        %v236 = vld [vmem:[%s192 + $0x8] sm:$0xff]
        %s237 = sld [smem:[%s182]]
        %s238 = sld [smem:[%s182 + $0x1]]
        %s239 = sld [smem:[%s182 + $0x2]]
        %s240 = sld [smem:[%s182 + $0x80]]
        %s241 = sld [smem:[%s182 + $0x81]]
        %s242 = sld [smem:[%s182 + $0x82]]
        %s243 = sld [smem:[%s182 + $0x100]]
        %s244 = sld [smem:[%s182 + $0x101]]
        %s245 = sld [smem:[%s182 + $0x102]]
        %v246 = vstv %s237
        %v247 = vmul.f32 %v246, %v226
        %v248 = vstv %s238
        %v249 = vmul.f32 %v248, %v233
        %v250 = vmul.f32 %v248, %v234
        %v251 = vadd.f32 %v247, %v249
        %v252 = vadd.f32 %v247, %v250
        %v253 = vstv %s239
        %v254 = vadd.f32 %v251, %v253
        %v255 = vadd.f32 %v252, %v253
        %v256 = vmul.f32 %v235, %v254
        %v257 = vmul.f32 %v236, %v255
        %v258 = vstv %s240
        %v259 = vmul.f32 %v258, %v226
        %v260 = vstv %s241
        %v261 = vmul.f32 %v260, %v233
        %v262 = vmul.f32 %v260, %v234
        %v263 = vadd.f32 %v259, %v261
        %v264 = vadd.f32 %v259, %v262
        %v265 = vstv %s242
        %v266 = vadd.f32 %v263, %v265
        %v267 = vadd.f32 %v264, %v265
        %v268 = vmul.f32 %v235, %v266
        %v269 = vmul.f32 %v236, %v267
        %v270 = vstv %s243
        %v271 = vmul.f32 %v270, %v226
        %v272 = vstv %s244
        %v273 = vmul.f32 %v272, %v233
        %v274 = vmul.f32 %v272, %v234
        %v275 = vadd.f32 %v271, %v273
        %v276 = vadd.f32 %v271, %v274
        %v277 = vstv %s245
        %v278 = vadd.f32 %v275, %v277
        %v279 = vadd.f32 %v276, %v277
        %v280 = vmul.f32 %v235, %v278
        %v281 = vmul.f32 %v236, %v279
        %vm282 = vcmask 130048
        %283 = vst.msk [vmem:[%s219] sm:$0xff] %vm282, %v256
        %284 = vst.msk [vmem:[%s219 + $0x8] sm:$0xff] %vm282, %v257
        %285 = vst.msk [vmem:[%s219 + $0x10] sm:$0xff] %vm282, %v268
        %286 = vst.msk [vmem:[%s219 + $0x18] sm:$0xff] %vm282, %v269
        %287 = vst.msk [vmem:[%s219 + $0x20] sm:$0xff] %vm282, %v280
        %288 = vst.msk [vmem:[%s219 + $0x28] sm:$0xff] %vm282, %v281
        %289 = vst.msk [vmem:[%s219 + $0x30] sm:$0xff] %vm282, 1.0
        %290 = vst.msk [vmem:[%s219 + $0x38] sm:$0xff] %vm282, 1.0
        %s291 = sand.u32 %s98, 1
        %s292 = scalar_lea.sflag [#allocation4], %s291
        %s293 = sand.u32 %s98, 1
        %s294 = smul.addr %s293, 64
        %s295 = scalar_lea.vmem [#allocation7], %s294
        // Predicated region
        $region37: #{tpu_custom_call.1} parent=27 // pred_check
          %p296 = pneg %p108
        $region38: #{tpu_custom_call.1} parent=27 // pred_check_branch
          %298 = sbr.rel (%p296) target = $region40
        $region39: #{tpu_custom_call.1} parent=27 // pred_region
          %s299 = smul.u32 2, %s27
          %301 = vsyncadd %s292, 0
          %s302 = smul.addr %s26, 8
          %s303 = sadd.s32 %s299, %s302
          %s304 = smul.addr %s303, 8
          %s305 = scalar_lea.hbm %s2, %s304
          %s306 = sshll.u32 %s295, 4
          %s307 = int_to_ptr.vmem [resolvable:$true] %s306
          %s308 = sshll.u32 %s305, 4
          %s309 = int_to_ptr.hbm [resolvable:$true] %s308
          %314 = dma.vmem_to_hbm [thread:$0]  %s307, 1024, %s309, %s292, 128, 128, 8
        $region40: #{tpu_custom_call.1} parent=27 // pred_fallthru
          _
      $region28: #{tpu_custom_call.1} parent=5 // pred_fallthru
        _
      %p315 = scmp.le.s32.totalorder 2, %s17
      // Predicated region
      $region41: #{tpu_custom_call.1} parent=5 // pred_check
        %p316 = pneg %p315
      $region42: #{tpu_custom_call.1} parent=5 // pred_check_branch
        %318 = sbr.rel (%p316) target = $region44
      $region43: #{tpu_custom_call.1} parent=5 // pred_region
        %s319 = ssub.s32 %s17, 2
        // Predicated region
        $region45: #{tpu_custom_call.1} parent=43 // pred_check
          %p320 = pneg %p114
        $region46: #{tpu_custom_call.1} parent=43 // pred_check_branch
          %322 = sbr.rel (%p320) target = $region48
        $region47: #{tpu_custom_call.1} parent=43 // pred_region
          %s323 = sand.u32 %s99, 1
          %s324 = scalar_lea.sflag [#allocation4], %s323
          %s325 = sand.u32 %s99, 1
          %s326 = smul.addr %s325, 64
          %s327 = scalar_lea.vmem [#allocation7], %s326
          %329 = dma.done %s324, 1024
        $region48: #{tpu_custom_call.1} parent=43 // pred_fallthru
          _
      $region44: #{tpu_custom_call.1} parent=5 // pred_fallthru
        _
    $region6: #{tpu_custom_call.1} parent=1 // loop_footer
      %s21 = sadd.s32 1, %s17
    $region7: #{tpu_custom_call.1} parent=1 // loop_footer_branch
      %16 = sbr.rel target = $region3
    $region8: #{tpu_custom_call.1} parent=1 // loop_exit
      _
    %330 = vsyncpa [#allocation3], 1
    %s331 = scalar_lea.sflag [#allocation3], 1
    %332 = vsyncpa %s331, 1
    %333 = vsyncpa [#allocation4], 1
    %s334 = scalar_lea.sflag [#allocation4], 1
    %335 = vsyncpa %s334, 1
    %336 = vsyncpa [#allocation5], 1
    %s337 = scalar_lea.sflag [#allocation5], 1
    %338 = vsyncpa %s337, 1

</llo_original>
